<compile_context>
chip_gen: v6e
topology: v6e:2x2x1
jax: 0.10.0
libtpu: 0.0.40
codegen_flags: <defaults>
</compile_context>

<pallas_src>
import math
import functools

import jax
import jax.numpy as jnp
from jax.experimental import pallas as pl
from jax.experimental.pallas import tpu as pltpu


def make_positional_encoding_table(data_len: int, d_model: int,
                                   dtype=jnp.float32) -> jax.Array:
    """Reproduces the buffer `pe` built in PositionalEncoding.__init__."""
    position = jnp.arange(data_len, dtype=jnp.float32)[:, None]          # (L, 1)
    div_term = jnp.exp(jnp.arange(d_model, dtype=jnp.float32)
                       * -(math.log(10000.0) / d_model))                 # (D,)
    angles = position * div_term[None, :]                                # (L, D)
    col = jnp.arange(d_model)
    # pe[:, 0::2] = sin(position * div_term[0::2])
    # pe[:, 1::2] = cos(position * div_term[1::2])
    pe = jnp.where((col % 2 == 0)[None, :], jnp.sin(angles), jnp.cos(angles))
    return pe[None].astype(dtype)                                        # (1, data_len, D)


# ---------------------------------------------------------------------------
# Kernels (operate on lane-dense 2-D slabs: x (bT, tC), pe (1, tC))
# ---------------------------------------------------------------------------

def _pe_add_kernel(x_ref, pe_ref, o_ref):
    # Broadcast-add of the PE row onto a block of batches.
    o_ref[...] = x_ref[...] + pe_ref[...]


def _pe_add_dropout_kernel(x_ref, pe_ref, bits_ref, o_ref, *,
                           threshold: int, scale: float):
    y = x_ref[...] + pe_ref[...]
    # Inverted dropout: keep iff uint32 bits >= threshold (P[keep] = 1 - p).
    keep = bits_ref[...] >= jnp.uint32(threshold)
    o_ref[...] = jnp.where(keep, y * jnp.asarray(scale, y.dtype),
                           jnp.zeros_like(y))


# ---------------------------------------------------------------------------
# Wrapper
# ---------------------------------------------------------------------------

# ~2 MiB (f32) per block: big enough to hit the HBM roofline, small enough
# that double-buffered x / bits / pe / out stays well inside 32 MiB scoped VMEM
# on every chip generation (v5e/v6e: 128 MiB physical, v7x: 64 MiB).
_MAX_BLOCK_ELEMS = 512 * 1024


def _choose_tiles(B: int, LD: int):
    if LD <= _MAX_BLOCK_ELEMS:
        tC = LD                                     # full (lane-dense) row
    else:
        tC = (_MAX_BLOCK_ELEMS // 128) * 128        # multiple of 128
    bT = min(B, max(1, _MAX_BLOCK_ELEMS // tC))
    if bT < B and bT % 8 != 0:
        # second-to-last block dim must be a multiple of 8 or equal B
        bT = min(B, max(8, (bT // 8) * 8))
    return bT, tC


def positional_encoding_forward(x: jax.Array, pe: jax.Array, *,
                                p: float = 0.1, training: bool = False,
                                rng_key: jax.Array | None = None) -> jax.Array:
    """Equivalent of PositionalEncoding.forward(x)."""
    B, L, D = x.shape
    LD = L * D
    pe_row = pe[:, :L, :].astype(x.dtype).reshape(1, LD)   # self.pe[:, :x.size(1)]
    x2 = x.reshape(B, LD)

    bT, tC = _choose_tiles(B, LD)
    grid = (pl.cdiv(B, bT), pl.cdiv(LD, tC))

    x_spec = pl.BlockSpec((bT, tC), lambda i, j: (i, j))
    pe_spec = pl.BlockSpec((1, tC), lambda i, j: (0, j))
    out_spec = pl.BlockSpec((bT, tC), lambda i, j: (i, j))

    use_dropout = bool(training) and float(p) > 0.0
    if use_dropout:
        if float(p) >= 1.0:
            return jnp.zeros_like(x)                # nn.Dropout(p=1.0).train()
        if rng_key is None:
            rng_key = jax.random.PRNGKey(0)
        # TODO(synk): dropout mask uses JAX RNG, not torch's RNG stream
        # (bit-identical reproduction of torch dropout is not possible).
        bits = jax.random.bits(rng_key, (B, LD), dtype=jnp.uint32)
        threshold = min(int(round(float(p) * 2.0 ** 32)), 0xFFFFFFFF)
        kernel = functools.partial(_pe_add_dropout_kernel,
                                   threshold=threshold,
                                   scale=1.0 / (1.0 - float(p)))
        in_specs = [x_spec, pe_spec, x_spec]
        args = (x2, pe_row, bits)
    else:
        kernel = _pe_add_kernel
        in_specs = [x_spec, pe_spec]
        args = (x2, pe_row)

    out2 = pl.pallas_call(
        kernel,
        out_shape=jax.ShapeDtypeStruct((B, LD), x.dtype),
        grid_spec=pltpu.PrefetchScalarGridSpec(
            num_scalar_prefetch=0,
            grid=grid,
            in_specs=in_specs,
            out_specs=out_spec,
        ),
        compiler_params=pltpu.CompilerParams(
            dimension_semantics=("parallel", "parallel"),
            vmem_limit_bytes=32 * 1024 * 1024,
        ),
    )(*args)

    return out2.reshape(B, L, D)


if __name__ == "__main__":
    # Module config (small, synthetic): d_model=32, dropout=0.1, data_len=16.
    d_model, dropout_p, data_len = 32, 0.1, 16
    B, L = 2, 8                                   # seq len 8 < data_len to exercise slicing

    key = jax.random.PRNGKey(0)
    kx, kdrop = jax.random.split(key)
    x = jax.random.normal(kx, (B, L, d_model), dtype=jnp.float32)

    pe = make_positional_encoding_table(data_len, d_model)

    # Eval-mode forward (dropout is identity) — check against pure-JAX reference.
    out_eval = positional_encoding_forward(x, pe, p=dropout_p, training=False)
    out_eval = jax.block_until_ready(out_eval)
    ref = x + pe[:, :L, :]
    assert out_eval.shape == x.shape and out_eval.dtype == x.dtype
    assert jnp.allclose(out_eval, ref, atol=1e-6, rtol=1e-6), "mismatch vs reference"

    # Training-mode forward (exercises in-kernel dropout path).
    out_train = positional_encoding_forward(x, pe, p=dropout_p, training=True,
                                            rng_key=kdrop)
    out_train = jax.block_until_ready(out_train)
    assert out_train.shape == x.shape and out_train.dtype == x.dtype
    # Every kept element must equal (x + pe) / (1 - p); dropped elements are 0.
    scaled_ref = ref / (1.0 - dropout_p)
    ok = jnp.all((out_train == 0)
                 | jnp.isclose(out_train, scaled_ref, atol=1e-5, rtol=1e-5))
    assert bool(ok), "training-mode dropout values mismatch"

    print("KERNEL_OK")
</pallas_src>

<mosaic_0001>
module attributes {stable_mosaic.version = 11 : i64} {
  func.func @_pe_add_kernel(%arg0: i32, %arg1: i32, %arg2: memref<2x256xf32, #tpu.memory_space<vmem>>, %arg3: memref<1x256xf32, #tpu.memory_space<vmem>>, %arg4: memref<2x256xf32, #tpu.memory_space<vmem>>) attributes {dimension_semantics = [#tpu.dimension_semantics<parallel>, #tpu.dimension_semantics<parallel>], iteration_bounds = array<i64: 1, 1>, scalar_prefetch = 0 : i64, scratch_operands = 0 : i64, tpu.core_type = #tpu.core_type<tc>, window_params = [{transform_indices = @transform_0, window_bounds = array<i64: 2, 256>}, {transform_indices = @transform_1, window_bounds = array<i64: 1, 256>}, {transform_indices = @transform_2, window_bounds = array<i64: 2, 256>}]} {
    %c0 = arith.constant 0 : index
    %c0_0 = arith.constant 0 : index
    %0 = vector.load %arg2[%c0, %c0_0] : memref<2x256xf32, #tpu.memory_space<vmem>>, vector<2x256xf32>
    %c0_1 = arith.constant 0 : index
    %c0_2 = arith.constant 0 : index
    %1 = vector.load %arg3[%c0_1, %c0_2] : memref<1x256xf32, #tpu.memory_space<vmem>>, vector<1x256xf32>
    %2 = vector.broadcast %1 : vector<1x256xf32> to vector<2x256xf32>
    %3 = arith.addf %0, %2 : vector<2x256xf32>
    %c0_3 = arith.constant 0 : index
    %c0_4 = arith.constant 0 : index
    %4 = vector.load %arg4[%c0_3, %c0_4] : memref<2x256xf32, #tpu.memory_space<vmem>>, vector<2x256xf32>
    tpu.vector_store %arg4[%c0_3, %c0_4], %3 {strides = array<i32>} : memref<2x256xf32, #tpu.memory_space<vmem>>, vector<2x256xf32>,
    return
  }
  func.func @transform_0(%arg0: i32, %arg1: i32) -> (i32, i32) {
    %c0_i32 = arith.constant 0 : i32
    return %arg0, %arg1 : i32, i32
  }
  func.func @transform_1(%arg0: i32, %arg1: i32) -> (i32, i32) {
    %c0_i32 = arith.constant 0 : i32
    %c0_i32_0 = arith.constant 0 : i32
    return %c0_i32, %arg1 : i32, i32
  }
  func.func @transform_2(%arg0: i32, %arg1: i32) -> (i32, i32) {
    %c0_i32 = arith.constant 0 : i32
    return %arg0, %arg1 : i32, i32
  }
}

</mosaic_0001>

<llo_original>
// kernel: tpu_custom_call.1
$region0: #{tpu_custom_call.1}
  #allocation0 [shape = 'u32[]', space=smem, size = 0x4, offset = 0x4, fixed_abs, tag = 'smem constant byte address 0x4 - core index']
  #allocation1 [shape = 'u32[144,128]{1,0:T(1,128)}', space=vmem, size = 0x12000, scoped, tag = 'internal scratch']
  %s0 = inlined_call_operand.hbm [shape: f32[2,256], index: 0, kind: input, shape index: {}]
  %s1 = inlined_call_operand.hbm [shape: f32[1,256], index: 1, kind: input, shape index: {}]
  %s2 = inlined_call_operand.hbm [shape: f32[2,256], index: 2, kind: output, shape index: {}]
  %s3 = sld [smem:[#allocation0]]
  $region26: #{tpu_custom_call.1} parent=0
    _
  %s5 = ssub.s32 1, %s3
  %s6 = scalar_select 0, %s5, %s3
  $region1: #{tpu_custom_call.1} parent=0
    #allocation2 [shape = 'u8[2048]{0}', space=vmem, size = 0x800, scoped, tag = 'input window, operand 0, single buffered']
    #allocation3 [shape = 's32[1]{0}', space=sflag, size = 0x4, scoped, tag = 'scoped memory for tpu_custom_call.1']
    #allocation4 [shape = 's32[1]{0}', space=sflag, size = 0x4, scoped, tag = 'scoped memory for tpu_custom_call.1']
    #allocation5 [shape = 'u8[1024]{0}', space=vmem, size = 0x400, scoped, tag = 'input window, operand 1, single buffered']
    #allocation6 [shape = 's32[1]{0}', space=sflag, size = 0x4, scoped, tag = 'scoped memory for tpu_custom_call.1']
    #allocation7 [shape = 'u8[2048]{0}', space=vmem, size = 0x800, scoped, tag = 'output window, operand 0, single buffered']
    %7 = vsyncpa [#allocation3], 0
    %8 = vsyncpa [#allocation6], 0
    %9 = vsyncpa [#allocation4], 0
    // Predicated region
    $region2: #{tpu_custom_call.1} parent=1 // pred_check
      _
    $region3: #{tpu_custom_call.1} parent=1 // pred_check_branch
      %11 = sbr.rel (0) target = $region5
    $region4: #{tpu_custom_call.1} parent=1 // pred_region
      %s13 = ssub.s32 64, 64
      %14 = vsyncadd [#allocation3], %s13
      %s16 = sshll.u32 [#allocation2], 4
      %s17 = int_to_ptr.vmem [resolvable:$true] %s16
      %19 = dma.hbm_to_vmem [thread:$0]  %s0, 64, %s17, [#allocation3]
    $region5: #{tpu_custom_call.1} parent=1 // pred_fallthru
      _
    // Predicated region
    $region6: #{tpu_custom_call.1} parent=1 // pred_check
      _
    $region7: #{tpu_custom_call.1} parent=1 // pred_check_branch
      %21 = sbr.rel (0) target = $region9
    $region8: #{tpu_custom_call.1} parent=1 // pred_region
      %s23 = ssub.s32 32, 32
      %24 = vsyncadd [#allocation6], %s23
      %s26 = sshll.u32 [#allocation5], 4
      %s27 = int_to_ptr.vmem [resolvable:$true] %s26
      %29 = dma.hbm_to_vmem [thread:$0]  %s1, 32, %s27, [#allocation6]
    $region9: #{tpu_custom_call.1} parent=1 // pred_fallthru
      _
    // Predicated region
    $region10: #{tpu_custom_call.1} parent=1 // pred_check
      _
    $region11: #{tpu_custom_call.1} parent=1 // pred_check_branch
      %31 = sbr.rel (0) target = $region13
    $region12: #{tpu_custom_call.1} parent=1 // pred_region
      %32 = dma.done [#allocation3], 64
    $region13: #{tpu_custom_call.1} parent=1 // pred_fallthru
      _
    // Predicated region
    $region14: #{tpu_custom_call.1} parent=1 // pred_check
      _
    $region15: #{tpu_custom_call.1} parent=1 // pred_check_branch
      %34 = sbr.rel (0) target = $region17
    $region16: #{tpu_custom_call.1} parent=1 // pred_region
      %35 = dma.done [#allocation6], 32
    $region17: #{tpu_custom_call.1} parent=1 // pred_fallthru
      _
    %v36 = vld [vmem:[#allocation2] sm:$0xf]
    %v37 = vld [vmem:[#allocation5] sm:$0x3]
    %v39 = vlaneseq
    %v40 = vshrl.u32 %v39, 7
    %v41 = vsub.s32 0, %v40
    %v42 = vrot.slane %v37, %v41
    %v43 = vlaneseq
    %v44 = vshrl.u32 %v43, 7
    %v45 = vsub.s32 1, %v44
    %v46 = vrot.slane %v37, %v45
    %v47 = vcombine.low %v42, %v46
    %v49 = vunpack.c.l.s4 1983009808
    %v50 = vunpack.c.0.s8 %v49
    %v51 = vlaneseq
    %v52 = vshrl.u32 %v51, 7
    %v53 = vsub.s32 %v50, %v52
    %v54 = vrot.slane %v47, %v53
    %v56 = vadd.f32 %v36, %v54
    %57 = vst [vmem:[#allocation7] sm:$0xf] %v56
    // Predicated region
    $region18: #{tpu_custom_call.1} parent=1 // pred_check
      _
    $region19: #{tpu_custom_call.1} parent=1 // pred_check_branch
      %59 = sbr.rel (0) target = $region21
    $region20: #{tpu_custom_call.1} parent=1 // pred_region
      %s61 = ssub.s32 64, 64
      %62 = vsyncadd [#allocation4], %s61
      %s64 = sshll.u32 [#allocation7], 4
      %s65 = int_to_ptr.vmem [resolvable:$true] %s64
      %67 = dma.vmem_to_hbm [thread:$0]  %s65, 64, %s2, [#allocation4]
    $region21: #{tpu_custom_call.1} parent=1 // pred_fallthru
      _
    // Predicated region
    $region22: #{tpu_custom_call.1} parent=1 // pred_check
      _
    $region23: #{tpu_custom_call.1} parent=1 // pred_check_branch
      %69 = sbr.rel (0) target = $region25
    $region24: #{tpu_custom_call.1} parent=1 // pred_region
      %70 = dma.done [#allocation4], 64
    $region25: #{tpu_custom_call.1} parent=1 // pred_fallthru
      _
    %71 = vsyncpa [#allocation3], 1
    %72 = vsyncpa [#allocation6], 1
    %73 = vsyncpa [#allocation4], 1

</llo_original>
